<compile_context>
chip_gen: v5e
topology: v5e:2x2
jax: 0.10.0
libtpu: 0.0.40
codegen_flags: <defaults>
</compile_context>

<pallas_src>
import functools

import jax
import jax.numpy as jnp
from jax import lax
from jax.experimental import pallas as pl
from jax.experimental.pallas import tpu as pltpu


# -----------------------------------------------------------------------------
# Pallas kernel: fused multi-block LSTM recurrence (single grid step).
# -----------------------------------------------------------------------------
def _fused_lstm_kernel(gx_ref, whh_ref, h0_ref, out_ref):
    """Fused recurrence over all blocks.

    gx_ref : (T, B, 4*NH)  precomputed input projection + bias; column layout
                           is gate-major [i | f | o | g], block-major within
                           each gate slab (matches h layout).
    whh_ref: (NH, 4*NH)    block-diagonal recurrent weights, same column layout.
    h0_ref : (B, NH)       initial hidden state, block-major features.
    out_ref: (T, B, NH)    per-timestep hidden states (lane-dense last dim).
    """
    T = gx_ref.shape[0]
    B = gx_ref.shape[1]
    NH = whh_ref.shape[0]

    whh = whh_ref[...]                         # (NH, 4*NH), stays resident
    h0 = h0_ref[...].astype(jnp.float32)       # (B, NH)
    c0 = jnp.zeros((B, NH), jnp.float32)

    def step(t, carry):
        h, c = carry
        # Recurrent projection: one MXU matmul with K = NH (=128).
        gates = gx_ref[t] + jnp.dot(h, whh, preferred_element_type=jnp.float32)
        # One wide sigmoid slab (i, f, o) + one tanh slab (g).
        sig = jax.nn.sigmoid(gates[:, 0:3 * NH])
        i_g = sig[:, 0:NH]
        f_g = sig[:, NH:2 * NH]
        o_g = sig[:, 2 * NH:3 * NH]
        g_g = jnp.tanh(gates[:, 3 * NH:4 * NH])
        c_n = f_g * c + i_g * g_g
        h_n = o_g * jnp.tanh(c_n)
        out_ref[t] = h_n                       # direct lane-dense store
        return (h_n, c_n)

    lax.fori_loop(0, T, step, (h0, c0), unroll=True)


# -----------------------------------------------------------------------------
# Wrapper: weight packing (block-diag + gate reorder), input-projection hoist,
# pallas_call, and output layout glue.
# -----------------------------------------------------------------------------
@functools.partial(jax.jit, static_argnames=("block_size",))
def trans_nonlinear_lstm_forward(v, dx, w_ih, w_hh, b_ih, b_hh, *, block_size):
    B, T, _ = dx.shape
    NB = w_ih.shape[0]
    H = block_size
    NH = NB * H
    G4 = 4 * NH
    f32 = jnp.float32

    dx = dx.astype(f32)
    v = v.astype(f32)
    w_ih = w_ih.astype(f32)
    w_hh = w_hh.astype(f32)
    bias = (b_ih + b_hh).astype(f32)           # (NB, 4H)

    # PyTorch gate row order is [i, f, g, o]; fused column order is [i, f, o, g].
    perm = jnp.array([0, 1, 3, 2])

    # W_ih: (NB, 4H, 2) -> (2, 4*NB*H); col = gate*NH + block*H + j.
    w_ih_g = w_ih.reshape(NB, 4, H, 2)[:, perm]              # (NB, 4, H, 2)
    wih_big = jnp.transpose(w_ih_g, (3, 1, 0, 2)).reshape(2, G4)

    # W_hh: block-diagonal (NH, 4*NH); row = block*H + k, col = gate*NH + block*H + j.
    w_hh_g = w_hh.reshape(NB, 4, H, H)[:, perm]              # (NB, 4, Hj, Hk)
    sub = jnp.transpose(w_hh_g, (0, 3, 1, 2))                # (NB, Hk, 4, Hj)
    eye = jnp.eye(NB, dtype=f32)
    whh_big = jnp.einsum('ip,ikgj->ikgpj', eye, sub).reshape(NH, G4)

    # bias: (NB, 4H) -> (4*NB*H,) in the fused column layout.
    bias_big = jnp.transpose(bias.reshape(NB, 4, H)[:, perm],
                             (1, 0, 2)).reshape(G4)

    # h0: v.reshape(B, H, NB)[:, :, i] per block, packed block-major -> (B, NH).
    h0 = jnp.transpose(v.reshape(B, H, NB), (0, 2, 1)).reshape(B, NH)

    # Input projection hoisted out of the serial recurrence (one XLA matmul).
    gx_all = jnp.einsum('btc,cg->tbg', dx, wih_big,
                        preferred_element_type=f32) + bias_big  # (T, B, 4*NH)

    out = pl.pallas_call(
        _fused_lstm_kernel,
        out_shape=jax.ShapeDtypeStruct((T, B, NH), f32),
        grid_spec=pltpu.PrefetchScalarGridSpec(
            num_scalar_prefetch=0,
            grid=(1,),
            in_specs=[
                pl.BlockSpec((T, B, G4), lambda i: (0, 0, 0)),   # gx_all
                pl.BlockSpec((NH, G4), lambda i: (0, 0)),        # whh_big
                pl.BlockSpec((B, NH), lambda i: (0, 0)),         # h0
            ],
            out_specs=pl.BlockSpec((T, B, NH), lambda i: (0, 0, 0)),
        ),
        compiler_params=pltpu.CompilerParams(
            dimension_semantics=("arbitrary",)),
    )(gx_all, whh_big, h0)

    # (T, B, NH) -> (B, T, NH); block-major features == torch.cat(dim=2) order.
    return jnp.transpose(out, (1, 0, 2))


# -----------------------------------------------------------------------------
# Pure-JAX reference (mirrors PyTorch nn.LSTM math) for validation.
# -----------------------------------------------------------------------------
def _reference_forward(v, dx, w_ih, w_hh, b_ih, b_hh, block_size):
    B, T, _ = dx.shape
    NB = w_ih.shape[0]
    H = block_size
    v_init = v.reshape(B, H, NB)
    outs = []
    for i in range(NB):
        h = v_init[:, :, i]
        c = jnp.zeros((B, H), jnp.float32)
        seq = []
        for t in range(T):
            gates = dx[:, t, :] @ w_ih[i].T + b_ih[i] + h @ w_hh[i].T + b_hh[i]
            i_g = jax.nn.sigmoid(gates[:, 0:H])
            f_g = jax.nn.sigmoid(gates[:, H:2 * H])
            g_g = jnp.tanh(gates[:, 2 * H:3 * H])
            o_g = jax.nn.sigmoid(gates[:, 3 * H:4 * H])
            c = f_g * c + i_g * g_g
            h = o_g * jnp.tanh(c)
            seq.append(h)
        outs.append(jnp.stack(seq, axis=1))          # (B, T, H)
    return jnp.concatenate(outs, axis=2)             # (B, T, NB*H)


if __name__ == "__main__":
    # GridCellConfig equivalent (only num_neurons / block_size matter here).
    num_neurons = 128
    block_size = 32
    num_blocks = num_neurons // block_size            # 4
    B, T = 2, 8

    key = jax.random.PRNGKey(0)
    k_v, k_dx, k_wih, k_whh, k_bih, k_bhh = jax.random.split(key, 6)

    v = jax.random.normal(k_v, (B, num_neurons), jnp.float32)
    dx = jax.random.normal(k_dx, (B, T, 2), jnp.float32)

    # PyTorch nn.LSTM init: U(-1/sqrt(H), 1/sqrt(H)) for all params.
    bound = 1.0 / (block_size ** 0.5)
    w_ih = jax.random.uniform(k_wih, (num_blocks, 4 * block_size, 2),
                              jnp.float32, -bound, bound)
    w_hh = jax.random.uniform(k_whh, (num_blocks, 4 * block_size, block_size),
                              jnp.float32, -bound, bound)
    b_ih = jax.random.uniform(k_bih, (num_blocks, 4 * block_size),
                              jnp.float32, -bound, bound)
    b_hh = jax.random.uniform(k_bhh, (num_blocks, 4 * block_size),
                              jnp.float32, -bound, bound)

    out = trans_nonlinear_lstm_forward(v, dx, w_ih, w_hh, b_ih, b_hh,
                                       block_size=block_size)
    out = jax.block_until_ready(out)
    assert out.shape == (B, T, num_neurons), out.shape

    ref = _reference_forward(v, dx, w_ih, w_hh, b_ih, b_hh, block_size)
    assert jnp.allclose(out, ref, atol=1e-3, rtol=1e-3), \
        float(jnp.max(jnp.abs(out - ref)))

    print("KERNEL_OK")
</pallas_src>

<mosaic_0001>
module attributes {stable_mosaic.version = 11 : i64} {
  func.func @_fused_lstm_kernel(%arg0: i32, %arg1: memref<8x2x512xf32, #tpu.memory_space<vmem>>, %arg2: memref<128x512xf32, #tpu.memory_space<vmem>>, %arg3: memref<2x128xf32, #tpu.memory_space<vmem>>, %arg4: memref<8x2x128xf32, #tpu.memory_space<vmem>>) attributes {dimension_semantics = [#tpu.dimension_semantics<arbitrary>], iteration_bounds = array<i64: 1>, scalar_prefetch = 0 : i64, scratch_operands = 0 : i64, tpu.core_type = #tpu.core_type<tc>, window_params = [{pipeline_mode = #tpu.pipeline_mode<synchronous>, transform_indices = @transform_0, window_bounds = array<i64: 8, 2, 512>}, {pipeline_mode = #tpu.pipeline_mode<synchronous>, transform_indices = @transform_1, window_bounds = array<i64: 128, 512>}, {pipeline_mode = #tpu.pipeline_mode<synchronous>, transform_indices = @transform_2, window_bounds = array<i64: 2, 128>}, {pipeline_mode = #tpu.pipeline_mode<synchronous>, transform_indices = @transform_3, window_bounds = array<i64: 8, 2, 128>}]} {
    %c0 = arith.constant 0 : index
    %c0_0 = arith.constant 0 : index
    %0 = vector.load %arg2[%c0, %c0_0] : memref<128x512xf32, #tpu.memory_space<vmem>>, vector<128x512xf32>
    %c0_1 = arith.constant 0 : index
    %c0_2 = arith.constant 0 : index
    %1 = vector.load %arg3[%c0_1, %c0_2] : memref<2x128xf32, #tpu.memory_space<vmem>>, vector<2x128xf32>
    %cst = arith.constant 0.000000e+00 : f32
    %2 = vector.broadcast %cst : f32 to vector<2x128xf32>
    %c0_i32 = arith.constant 0 : i32
    %3 = arith.index_cast %c0_i32 : i32 to index
    %c0_3 = arith.constant 0 : index
    %c0_4 = arith.constant 0 : index
    %4 = vector.load %arg1[%3, %c0_3, %c0_4] : memref<8x2x512xf32, #tpu.memory_space<vmem>>, vector<1x2x512xf32>
    %5 = vector.shape_cast %4 : vector<1x2x512xf32> to vector<2x512xf32>
    %cst_5 = arith.constant dense<0.000000e+00> : vector<2x512xf32>
    %6 = tpu.matmul %1, %0, %cst_5 {dimension_numbers = #tpu.dot_dimension_numbers<[1], [0], [0], [1], [0, 0, 1, 1], [], []>} : vector<2x128xf32>, vector<128x512xf32>, vector<2x512xf32> -> vector<2x512xf32>
    %7 = arith.addf %5, %6 : vector<2x512xf32>
    %8 = vector.extract_strided_slice %7 {offsets = [0, 0], sizes = [2, 384], strides = [1, 1]} : vector<2x512xf32> to vector<2x384xf32>
    %9 = arith.negf %8 : vector<2x384xf32>
    %10 = math.exp %9 : vector<2x384xf32>
    %cst_6 = arith.constant 1.000000e+00 : f32
    %11 = vector.broadcast %cst_6 : f32 to vector<2x384xf32>
    %12 = arith.addf %11, %10 : vector<2x384xf32>
    %13 = arith.divf %11, %12 : vector<2x384xf32>
    %14 = vector.extract_strided_slice %13 {offsets = [0, 0], sizes = [2, 128], strides = [1, 1]} : vector<2x384xf32> to vector<2x128xf32>
    %15 = vector.extract_strided_slice %13 {offsets = [0, 128], sizes = [2, 128], strides = [1, 1]} : vector<2x384xf32> to vector<2x128xf32>
    %16 = vector.extract_strided_slice %13 {offsets = [0, 256], sizes = [2, 128], strides = [1, 1]} : vector<2x384xf32> to vector<2x128xf32>
    %17 = vector.extract_strided_slice %7 {offsets = [0, 384], sizes = [2, 128], strides = [1, 1]} : vector<2x512xf32> to vector<2x128xf32>
    %18 = math.tanh %17 : vector<2x128xf32>
    %19 = arith.mulf %15, %2 : vector<2x128xf32>
    %20 = arith.mulf %14, %18 : vector<2x128xf32>
    %21 = arith.addf %19, %20 : vector<2x128xf32>
    %22 = math.tanh %21 : vector<2x128xf32>
    %23 = arith.mulf %16, %22 : vector<2x128xf32>
    %24 = arith.index_cast %c0_i32 : i32 to index
    %c0_7 = arith.constant 0 : index
    %c0_8 = arith.constant 0 : index
    %25 = vector.load %arg4[%24, %c0_7, %c0_8] : memref<8x2x128xf32, #tpu.memory_space<vmem>>, vector<1x2x128xf32>
    %26 = vector.shape_cast %25 : vector<1x2x128xf32> to vector<2x128xf32>
    %27 = vector.shape_cast %23 : vector<2x128xf32> to vector<1x2x128xf32>
    tpu.vector_store %arg4[%24, %c0_7, %c0_8], %27 {strides = array<i32>} : memref<8x2x128xf32, #tpu.memory_space<vmem>>, vector<1x2x128xf32>,
    %c1_i32 = arith.constant 1 : i32
    %28 = arith.index_cast %c1_i32 : i32 to index
    %c0_9 = arith.constant 0 : index
    %c0_10 = arith.constant 0 : index
    %29 = vector.load %arg1[%28, %c0_9, %c0_10] : memref<8x2x512xf32, #tpu.memory_space<vmem>>, vector<1x2x512xf32>
    %30 = vector.shape_cast %29 : vector<1x2x512xf32> to vector<2x512xf32>
    %cst_11 = arith.constant dense<0.000000e+00> : vector<2x512xf32>
    %31 = tpu.matmul %23, %0, %cst_11 {dimension_numbers = #tpu.dot_dimension_numbers<[1], [0], [0], [1], [0, 0, 1, 1], [], []>} : vector<2x128xf32>, vector<128x512xf32>, vector<2x512xf32> -> vector<2x512xf32>
    %32 = arith.addf %30, %31 : vector<2x512xf32>
    %33 = vector.extract_strided_slice %32 {offsets = [0, 0], sizes = [2, 384], strides = [1, 1]} : vector<2x512xf32> to vector<2x384xf32>
    %34 = arith.negf %33 : vector<2x384xf32>
    %35 = math.exp %34 : vector<2x384xf32>
    %cst_12 = arith.constant 1.000000e+00 : f32
    %36 = vector.broadcast %cst_12 : f32 to vector<2x384xf32>
    %37 = arith.addf %36, %35 : vector<2x384xf32>
    %38 = arith.divf %36, %37 : vector<2x384xf32>
    %39 = vector.extract_strided_slice %38 {offsets = [0, 0], sizes = [2, 128], strides = [1, 1]} : vector<2x384xf32> to vector<2x128xf32>
    %40 = vector.extract_strided_slice %38 {offsets = [0, 128], sizes = [2, 128], strides = [1, 1]} : vector<2x384xf32> to vector<2x128xf32>
    %41 = vector.extract_strided_slice %38 {offsets = [0, 256], sizes = [2, 128], strides = [1, 1]} : vector<2x384xf32> to vector<2x128xf32>
    %42 = vector.extract_strided_slice %32 {offsets = [0, 384], sizes = [2, 128], strides = [1, 1]} : vector<2x512xf32> to vector<2x128xf32>
    %43 = math.tanh %42 : vector<2x128xf32>
    %44 = arith.mulf %40, %21 : vector<2x128xf32>
    %45 = arith.mulf %39, %43 : vector<2x128xf32>
    %46 = arith.addf %44, %45 : vector<2x128xf32>
    %47 = math.tanh %46 : vector<2x128xf32>
    %48 = arith.mulf %41, %47 : vector<2x128xf32>
    %49 = arith.index_cast %c1_i32 : i32 to index
    %c0_13 = arith.constant 0 : index
    %c0_14 = arith.constant 0 : index
    %50 = vector.load %arg4[%49, %c0_13, %c0_14] : memref<8x2x128xf32, #tpu.memory_space<vmem>>, vector<1x2x128xf32>
    %51 = vector.shape_cast %50 : vector<1x2x128xf32> to vector<2x128xf32>
    %52 = vector.shape_cast %48 : vector<2x128xf32> to vector<1x2x128xf32>
    tpu.vector_store %arg4[%49, %c0_13, %c0_14], %52 {strides = array<i32>} : memref<8x2x128xf32, #tpu.memory_space<vmem>>, vector<1x2x128xf32>,
    %c2_i32 = arith.constant 2 : i32
    %53 = arith.index_cast %c2_i32 : i32 to index
    %c0_15 = arith.constant 0 : index
    %c0_16 = arith.constant 0 : index
    %54 = vector.load %arg1[%53, %c0_15, %c0_16] : memref<8x2x512xf32, #tpu.memory_space<vmem>>, vector<1x2x512xf32>
    %55 = vector.shape_cast %54 : vector<1x2x512xf32> to vector<2x512xf32>
    %cst_17 = arith.constant dense<0.000000e+00> : vector<2x512xf32>
    %56 = tpu.matmul %48, %0, %cst_17 {dimension_numbers = #tpu.dot_dimension_numbers<[1], [0], [0], [1], [0, 0, 1, 1], [], []>} : vector<2x128xf32>, vector<128x512xf32>, vector<2x512xf32> -> vector<2x512xf32>
    %57 = arith.addf %55, %56 : vector<2x512xf32>
    %58 = vector.extract_strided_slice %57 {offsets = [0, 0], sizes = [2, 384], strides = [1, 1]} : vector<2x512xf32> to vector<2x384xf32>
    %59 = arith.negf %58 : vector<2x384xf32>
    %60 = math.exp %59 : vector<2x384xf32>
    %cst_18 = arith.constant 1.000000e+00 : f32
    %61 = vector.broadcast %cst_18 : f32 to vector<2x384xf32>
    %62 = arith.addf %61, %60 : vector<2x384xf32>
    %63 = arith.divf %61, %62 : vector<2x384xf32>
    %64 = vector.extract_strided_slice %63 {offsets = [0, 0], sizes = [2, 128], strides = [1, 1]} : vector<2x384xf32> to vector<2x128xf32>
    %65 = vector.extract_strided_slice %63 {offsets = [0, 128], sizes = [2, 128], strides = [1, 1]} : vector<2x384xf32> to vector<2x128xf32>
    %66 = vector.extract_strided_slice %63 {offsets = [0, 256], sizes = [2, 128], strides = [1, 1]} : vector<2x384xf32> to vector<2x128xf32>
    %67 = vector.extract_strided_slice %57 {offsets = [0, 384], sizes = [2, 128], strides = [1, 1]} : vector<2x512xf32> to vector<2x128xf32>
    %68 = math.tanh %67 : vector<2x128xf32>
    %69 = arith.mulf %65, %46 : vector<2x128xf32>
    %70 = arith.mulf %64, %68 : vector<2x128xf32>
    %71 = arith.addf %69, %70 : vector<2x128xf32>
    %72 = math.tanh %71 : vector<2x128xf32>
    %73 = arith.mulf %66, %72 : vector<2x128xf32>
    %74 = arith.index_cast %c2_i32 : i32 to index
    %c0_19 = arith.constant 0 : index
    %c0_20 = arith.constant 0 : index
    %75 = vector.load %arg4[%74, %c0_19, %c0_20] : memref<8x2x128xf32, #tpu.memory_space<vmem>>, vector<1x2x128xf32>
    %76 = vector.shape_cast %75 : vector<1x2x128xf32> to vector<2x128xf32>
    %77 = vector.shape_cast %73 : vector<2x128xf32> to vector<1x2x128xf32>
    tpu.vector_store %arg4[%74, %c0_19, %c0_20], %77 {strides = array<i32>} : memref<8x2x128xf32, #tpu.memory_space<vmem>>, vector<1x2x128xf32>,
    %c3_i32 = arith.constant 3 : i32
    %78 = arith.index_cast %c3_i32 : i32 to index
    %c0_21 = arith.constant 0 : index
    %c0_22 = arith.constant 0 : index
    %79 = vector.load %arg1[%78, %c0_21, %c0_22] : memref<8x2x512xf32, #tpu.memory_space<vmem>>, vector<1x2x512xf32>
    %80 = vector.shape_cast %79 : vector<1x2x512xf32> to vector<2x512xf32>
    %cst_23 = arith.constant dense<0.000000e+00> : vector<2x512xf32>
    %81 = tpu.matmul %73, %0, %cst_23 {dimension_numbers = #tpu.dot_dimension_numbers<[1], [0], [0], [1], [0, 0, 1, 1], [], []>} : vector<2x128xf32>, vector<128x512xf32>, vector<2x512xf32> -> vector<2x512xf32>
    %82 = arith.addf %80, %81 : vector<2x512xf32>
    %83 = vector.extract_strided_slice %82 {offsets = [0, 0], sizes = [2, 384], strides = [1, 1]} : vector<2x512xf32> to vector<2x384xf32>
    %84 = arith.negf %83 : vector<2x384xf32>
    %85 = math.exp %84 : vector<2x384xf32>
    %cst_24 = arith.constant 1.000000e+00 : f32
    %86 = vector.broadcast %cst_24 : f32 to vector<2x384xf32>
    %87 = arith.addf %86, %85 : vector<2x384xf32>
    %88 = arith.divf %86, %87 : vector<2x384xf32>
    %89 = vector.extract_strided_slice %88 {offsets = [0, 0], sizes = [2, 128], strides = [1, 1]} : vector<2x384xf32> to vector<2x128xf32>
    %90 = vector.extract_strided_slice %88 {offsets = [0, 128], sizes = [2, 128], strides = [1, 1]} : vector<2x384xf32> to vector<2x128xf32>
    %91 = vector.extract_strided_slice %88 {offsets = [0, 256], sizes = [2, 128], strides = [1, 1]} : vector<2x384xf32> to vector<2x128xf32>
    %92 = vector.extract_strided_slice %82 {offsets = [0, 384], sizes = [2, 128], strides = [1, 1]} : vector<2x512xf32> to vector<2x128xf32>
    %93 = math.tanh %92 : vector<2x128xf32>
    %94 = arith.mulf %90, %71 : vector<2x128xf32>
    %95 = arith.mulf %89, %93 : vector<2x128xf32>
    %96 = arith.addf %94, %95 : vector<2x128xf32>
    %97 = math.tanh %96 : vector<2x128xf32>
    %98 = arith.mulf %91, %97 : vector<2x128xf32>
    %99 = arith.index_cast %c3_i32 : i32 to index
    %c0_25 = arith.constant 0 : index
    %c0_26 = arith.constant 0 : index
    %100 = vector.load %arg4[%99, %c0_25, %c0_26] : memref<8x2x128xf32, #tpu.memory_space<vmem>>, vector<1x2x128xf32>
    %101 = vector.shape_cast %100 : vector<1x2x128xf32> to vector<2x128xf32>
    %102 = vector.shape_cast %98 : vector<2x128xf32> to vector<1x2x128xf32>
    tpu.vector_store %arg4[%99, %c0_25, %c0_26], %102 {strides = array<i32>} : memref<8x2x128xf32, #tpu.memory_space<vmem>>, vector<1x2x128xf32>,
    %c4_i32 = arith.constant 4 : i32
    %103 = arith.index_cast %c4_i32 : i32 to index
    %c0_27 = arith.constant 0 : index
    %c0_28 = arith.constant 0 : index
    %104 = vector.load %arg1[%103, %c0_27, %c0_28] : memref<8x2x512xf32, #tpu.memory_space<vmem>>, vector<1x2x512xf32>
    %105 = vector.shape_cast %104 : vector<1x2x512xf32> to vector<2x512xf32>
    %cst_29 = arith.constant dense<0.000000e+00> : vector<2x512xf32>
    %106 = tpu.matmul %98, %0, %cst_29 {dimension_numbers = #tpu.dot_dimension_numbers<[1], [0], [0], [1], [0, 0, 1, 1], [], []>} : vector<2x128xf32>, vector<128x512xf32>, vector<2x512xf32> -> vector<2x512xf32>
    %107 = arith.addf %105, %106 : vector<2x512xf32>
    %108 = vector.extract_strided_slice %107 {offsets = [0, 0], sizes = [2, 384], strides = [1, 1]} : vector<2x512xf32> to vector<2x384xf32>
    %109 = arith.negf %108 : vector<2x384xf32>
    %110 = math.exp %109 : vector<2x384xf32>
    %cst_30 = arith.constant 1.000000e+00 : f32
    %111 = vector.broadcast %cst_30 : f32 to vector<2x384xf32>
    %112 = arith.addf %111, %110 : vector<2x384xf32>
    %113 = arith.divf %111, %112 : vector<2x384xf32>
    %114 = vector.extract_strided_slice %113 {offsets = [0, 0], sizes = [2, 128], strides = [1, 1]} : vector<2x384xf32> to vector<2x128xf32>
    %115 = vector.extract_strided_slice %113 {offsets = [0, 128], sizes = [2, 128], strides = [1, 1]} : vector<2x384xf32> to vector<2x128xf32>
    %116 = vector.extract_strided_slice %113 {offsets = [0, 256], sizes = [2, 128], strides = [1, 1]} : vector<2x384xf32> to vector<2x128xf32>
    %117 = vector.extract_strided_slice %107 {offsets = [0, 384], sizes = [2, 128], strides = [1, 1]} : vector<2x512xf32> to vector<2x128xf32>
    %118 = math.tanh %117 : vector<2x128xf32>
    %119 = arith.mulf %115, %96 : vector<2x128xf32>
    %120 = arith.mulf %114, %118 : vector<2x128xf32>
    %121 = arith.addf %119, %120 : vector<2x128xf32>
    %122 = math.tanh %121 : vector<2x128xf32>
    %123 = arith.mulf %116, %122 : vector<2x128xf32>
    %124 = arith.index_cast %c4_i32 : i32 to index
    %c0_31 = arith.constant 0 : index
    %c0_32 = arith.constant 0 : index
    %125 = vector.load %arg4[%124, %c0_31, %c0_32] : memref<8x2x128xf32, #tpu.memory_space<vmem>>, vector<1x2x128xf32>
    %126 = vector.shape_cast %125 : vector<1x2x128xf32> to vector<2x128xf32>
    %127 = vector.shape_cast %123 : vector<2x128xf32> to vector<1x2x128xf32>
    tpu.vector_store %arg4[%124, %c0_31, %c0_32], %127 {strides = array<i32>} : memref<8x2x128xf32, #tpu.memory_space<vmem>>, vector<1x2x128xf32>,
    %c5_i32 = arith.constant 5 : i32
    %128 = arith.index_cast %c5_i32 : i32 to index
    %c0_33 = arith.constant 0 : index
    %c0_34 = arith.constant 0 : index
    %129 = vector.load %arg1[%128, %c0_33, %c0_34] : memref<8x2x512xf32, #tpu.memory_space<vmem>>, vector<1x2x512xf32>
    %130 = vector.shape_cast %129 : vector<1x2x512xf32> to vector<2x512xf32>
    %cst_35 = arith.constant dense<0.000000e+00> : vector<2x512xf32>
    %131 = tpu.matmul %123, %0, %cst_35 {dimension_numbers = #tpu.dot_dimension_numbers<[1], [0], [0], [1], [0, 0, 1, 1], [], []>} : vector<2x128xf32>, vector<128x512xf32>, vector<2x512xf32> -> vector<2x512xf32>
    %132 = arith.addf %130, %131 : vector<2x512xf32>
    %133 = vector.extract_strided_slice %132 {offsets = [0, 0], sizes = [2, 384], strides = [1, 1]} : vector<2x512xf32> to vector<2x384xf32>
    %134 = arith.negf %133 : vector<2x384xf32>
    %135 = math.exp %134 : vector<2x384xf32>
    %cst_36 = arith.constant 1.000000e+00 : f32
    %136 = vector.broadcast %cst_36 : f32 to vector<2x384xf32>
    %137 = arith.addf %136, %135 : vector<2x384xf32>
    %138 = arith.divf %136, %137 : vector<2x384xf32>
    %139 = vector.extract_strided_slice %138 {offsets = [0, 0], sizes = [2, 128], strides = [1, 1]} : vector<2x384xf32> to vector<2x128xf32>
    %140 = vector.extract_strided_slice %138 {offsets = [0, 128], sizes = [2, 128], strides = [1, 1]} : vector<2x384xf32> to vector<2x128xf32>
    %141 = vector.extract_strided_slice %138 {offsets = [0, 256], sizes = [2, 128], strides = [1, 1]} : vector<2x384xf32> to vector<2x128xf32>
    %142 = vector.extract_strided_slice %132 {offsets = [0, 384], sizes = [2, 128], strides = [1, 1]} : vector<2x512xf32> to vector<2x128xf32>
    %143 = math.tanh %142 : vector<2x128xf32>
    %144 = arith.mulf %140, %121 : vector<2x128xf32>
    %145 = arith.mulf %139, %143 : vector<2x128xf32>
    %146 = arith.addf %144, %145 : vector<2x128xf32>
    %147 = math.tanh %146 : vector<2x128xf32>
    %148 = arith.mulf %141, %147 : vector<2x128xf32>
    %149 = arith.index_cast %c5_i32 : i32 to index
    %c0_37 = arith.constant 0 : index
    %c0_38 = arith.constant 0 : index
    %150 = vector.load %arg4[%149, %c0_37, %c0_38] : memref<8x2x128xf32, #tpu.memory_space<vmem>>, vector<1x2x128xf32>
    %151 = vector.shape_cast %150 : vector<1x2x128xf32> to vector<2x128xf32>
    %152 = vector.shape_cast %148 : vector<2x128xf32> to vector<1x2x128xf32>
    tpu.vector_store %arg4[%149, %c0_37, %c0_38], %152 {strides = array<i32>} : memref<8x2x128xf32, #tpu.memory_space<vmem>>, vector<1x2x128xf32>,
    %c6_i32 = arith.constant 6 : i32
    %153 = arith.index_cast %c6_i32 : i32 to index
    %c0_39 = arith.constant 0 : index
    %c0_40 = arith.constant 0 : index
    %154 = vector.load %arg1[%153, %c0_39, %c0_40] : memref<8x2x512xf32, #tpu.memory_space<vmem>>, vector<1x2x512xf32>
    %155 = vector.shape_cast %154 : vector<1x2x512xf32> to vector<2x512xf32>
    %cst_41 = arith.constant dense<0.000000e+00> : vector<2x512xf32>
    %156 = tpu.matmul %148, %0, %cst_41 {dimension_numbers = #tpu.dot_dimension_numbers<[1], [0], [0], [1], [0, 0, 1, 1], [], []>} : vector<2x128xf32>, vector<128x512xf32>, vector<2x512xf32> -> vector<2x512xf32>
    %157 = arith.addf %155, %156 : vector<2x512xf32>
    %158 = vector.extract_strided_slice %157 {offsets = [0, 0], sizes = [2, 384], strides = [1, 1]} : vector<2x512xf32> to vector<2x384xf32>
    %159 = arith.negf %158 : vector<2x384xf32>
    %160 = math.exp %159 : vector<2x384xf32>
    %cst_42 = arith.constant 1.000000e+00 : f32
    %161 = vector.broadcast %cst_42 : f32 to vector<2x384xf32>
    %162 = arith.addf %161, %160 : vector<2x384xf32>
    %163 = arith.divf %161, %162 : vector<2x384xf32>
    %164 = vector.extract_strided_slice %163 {offsets = [0, 0], sizes = [2, 128], strides = [1, 1]} : vector<2x384xf32> to vector<2x128xf32>
    %165 = vector.extract_strided_slice %163 {offsets = [0, 128], sizes = [2, 128], strides = [1, 1]} : vector<2x384xf32> to vector<2x128xf32>
    %166 = vector.extract_strided_slice %163 {offsets = [0, 256], sizes = [2, 128], strides = [1, 1]} : vector<2x384xf32> to vector<2x128xf32>
    %167 = vector.extract_strided_slice %157 {offsets = [0, 384], sizes = [2, 128], strides = [1, 1]} : vector<2x512xf32> to vector<2x128xf32>
    %168 = math.tanh %167 : vector<2x128xf32>
    %169 = arith.mulf %165, %146 : vector<2x128xf32>
    %170 = arith.mulf %164, %168 : vector<2x128xf32>
    %171 = arith.addf %169, %170 : vector<2x128xf32>
    %172 = math.tanh %171 : vector<2x128xf32>
    %173 = arith.mulf %166, %172 : vector<2x128xf32>
    %174 = arith.index_cast %c6_i32 : i32 to index
    %c0_43 = arith.constant 0 : index
    %c0_44 = arith.constant 0 : index
    %175 = vector.load %arg4[%174, %c0_43, %c0_44] : memref<8x2x128xf32, #tpu.memory_space<vmem>>, vector<1x2x128xf32>
    %176 = vector.shape_cast %175 : vector<1x2x128xf32> to vector<2x128xf32>
    %177 = vector.shape_cast %173 : vector<2x128xf32> to vector<1x2x128xf32>
    tpu.vector_store %arg4[%174, %c0_43, %c0_44], %177 {strides = array<i32>} : memref<8x2x128xf32, #tpu.memory_space<vmem>>, vector<1x2x128xf32>,
    %c7_i32 = arith.constant 7 : i32
    %178 = arith.index_cast %c7_i32 : i32 to index
    %c0_45 = arith.constant 0 : index
    %c0_46 = arith.constant 0 : index
    %179 = vector.load %arg1[%178, %c0_45, %c0_46] : memref<8x2x512xf32, #tpu.memory_space<vmem>>, vector<1x2x512xf32>
    %180 = vector.shape_cast %179 : vector<1x2x512xf32> to vector<2x512xf32>
    %cst_47 = arith.constant dense<0.000000e+00> : vector<2x512xf32>
    %181 = tpu.matmul %173, %0, %cst_47 {dimension_numbers = #tpu.dot_dimension_numbers<[1], [0], [0], [1], [0, 0, 1, 1], [], []>} : vector<2x128xf32>, vector<128x512xf32>, vector<2x512xf32> -> vector<2x512xf32>
    %182 = arith.addf %180, %181 : vector<2x512xf32>
    %183 = vector.extract_strided_slice %182 {offsets = [0, 0], sizes = [2, 384], strides = [1, 1]} : vector<2x512xf32> to vector<2x384xf32>
    %184 = arith.negf %183 : vector<2x384xf32>
    %185 = math.exp %184 : vector<2x384xf32>
    %cst_48 = arith.constant 1.000000e+00 : f32
    %186 = vector.broadcast %cst_48 : f32 to vector<2x384xf32>
    %187 = arith.addf %186, %185 : vector<2x384xf32>
    %188 = arith.divf %186, %187 : vector<2x384xf32>
    %189 = vector.extract_strided_slice %188 {offsets = [0, 0], sizes = [2, 128], strides = [1, 1]} : vector<2x384xf32> to vector<2x128xf32>
    %190 = vector.extract_strided_slice %188 {offsets = [0, 128], sizes = [2, 128], strides = [1, 1]} : vector<2x384xf32> to vector<2x128xf32>
    %191 = vector.extract_strided_slice %188 {offsets = [0, 256], sizes = [2, 128], strides = [1, 1]} : vector<2x384xf32> to vector<2x128xf32>
    %192 = vector.extract_strided_slice %182 {offsets = [0, 384], sizes = [2, 128], strides = [1, 1]} : vector<2x512xf32> to vector<2x128xf32>
    %193 = math.tanh %192 : vector<2x128xf32>
    %194 = arith.mulf %190, %171 : vector<2x128xf32>
    %195 = arith.mulf %189, %193 : vector<2x128xf32>
    %196 = arith.addf %194, %195 : vector<2x128xf32>
    %197 = math.tanh %196 : vector<2x128xf32>
    %198 = arith.mulf %191, %197 : vector<2x128xf32>
    %199 = arith.index_cast %c7_i32 : i32 to index
    %c0_49 = arith.constant 0 : index
    %c0_50 = arith.constant 0 : index
    %200 = vector.load %arg4[%199, %c0_49, %c0_50] : memref<8x2x128xf32, #tpu.memory_space<vmem>>, vector<1x2x128xf32>
    %201 = vector.shape_cast %200 : vector<1x2x128xf32> to vector<2x128xf32>
    %202 = vector.shape_cast %198 : vector<2x128xf32> to vector<1x2x128xf32>
    tpu.vector_store %arg4[%199, %c0_49, %c0_50], %202 {strides = array<i32>} : memref<8x2x128xf32, #tpu.memory_space<vmem>>, vector<1x2x128xf32>,
    %c8_i32 = arith.constant 8 : i32
    return
  }
  func.func @transform_0(%arg0: i32) -> (i32, i32, i32) {
    %c0_i32 = arith.constant 0 : i32
    %c0_i32_0 = arith.constant 0 : i32
    %c0_i32_1 = arith.constant 0 : i32
    %c0_i32_2 = arith.constant 0 : i32
    return %c0_i32, %c0_i32_0, %c0_i32_1 : i32, i32, i32
  }
  func.func @transform_1(%arg0: i32) -> (i32, i32) {
    %c0_i32 = arith.constant 0 : i32
    %c0_i32_0 = arith.constant 0 : i32
    %c0_i32_1 = arith.constant 0 : i32
    return %c0_i32, %c0_i32_0 : i32, i32
  }
  func.func @transform_2(%arg0: i32) -> (i32, i32) {
    %c0_i32 = arith.constant 0 : i32
    %c0_i32_0 = arith.constant 0 : i32
    %c0_i32_1 = arith.constant 0 : i32
    return %c0_i32, %c0_i32_0 : i32, i32
  }
  func.func @transform_3(%arg0: i32) -> (i32, i32, i32) {
    %c0_i32 = arith.constant 0 : i32
    %c0_i32_0 = arith.constant 0 : i32
    %c0_i32_1 = arith.constant 0 : i32
    %c0_i32_2 = arith.constant 0 : i32
    return %c0_i32, %c0_i32_0, %c0_i32_1 : i32, i32, i32
  }
}

</mosaic_0001>

<llo_original>
// kernel: trans_nonlinear_lstm_forward.1
$region0: #{trans_nonlinear_lstm_forward.1}
  #allocation0 [shape = 'u32[]', space=smem, size = 0x4, offset = 0x4, fixed_abs, tag = 'smem constant byte address 0x4 - core index']
  #allocation1 [shape = 'u32[72,128]{1,0:T(1,128)}', space=vmem, size = 0x9000, scoped, tag = 'internal scratch']
  %s0 = inlined_call_operand.vmem [shape: f32[8,2,512], index: 0, kind: input, shape index: {}]
  %s1 = inlined_call_operand.vmem [shape: f32[128,512], index: 1, kind: input, shape index: {}]
  %s2 = inlined_call_operand.vmem [shape: f32[2,128], index: 2, kind: input, shape index: {}]
  %s3 = inlined_call_operand.vmem [shape: f32[8,2,128], index: 3, kind: output, shape index: {}]
  %s4 = sld [smem:[#allocation0]]
  $region22: #{trans_nonlinear_lstm_forward.1} parent=0
    _
  %s6 = ssub.s32 1, %s4
  %s7 = scalar_select 0, %s6, %s4
  // Predicated region
  $region2: #{trans_nonlinear_lstm_forward.1} parent=0 // pred_check
    _
  $region3: #{trans_nonlinear_lstm_forward.1} parent=0 // pred_check_branch
    %9 = sbr.rel (0) target = $region5
  $region4: #{trans_nonlinear_lstm_forward.1} parent=0 // pred_region
    _
  $region5: #{trans_nonlinear_lstm_forward.1} parent=0 // pred_fallthru
    _
  // Predicated region
  $region6: #{trans_nonlinear_lstm_forward.1} parent=0 // pred_check
    _
  $region7: #{trans_nonlinear_lstm_forward.1} parent=0 // pred_check_branch
    %11 = sbr.rel (0) target = $region9
  $region8: #{trans_nonlinear_lstm_forward.1} parent=0 // pred_region
    _
  $region9: #{trans_nonlinear_lstm_forward.1} parent=0 // pred_fallthru
    _
  // Predicated region
  $region10: #{trans_nonlinear_lstm_forward.1} parent=0 // pred_check
    _
  $region11: #{trans_nonlinear_lstm_forward.1} parent=0 // pred_check_branch
    %13 = sbr.rel (0) target = $region13
  $region12: #{trans_nonlinear_lstm_forward.1} parent=0 // pred_region
    _
  $region13: #{trans_nonlinear_lstm_forward.1} parent=0 // pred_fallthru
    _
  %v14 = vld [vmem:[%s1] sm:$0xff]
  %v15 = vld [vmem:[%s1 + $0x8] sm:$0xff]
  %v16 = vld [vmem:[%s1 + $0x10] sm:$0xff]
  %v17 = vld [vmem:[%s1 + $0x18] sm:$0xff]
  %v18 = vld [vmem:[%s1 + $0x20] sm:$0xff]
  %v19 = vld [vmem:[%s1 + $0x28] sm:$0xff]
  %v20 = vld [vmem:[%s1 + $0x30] sm:$0xff]
  %v21 = vld [vmem:[%s1 + $0x38] sm:$0xff]
  %v22 = vld [vmem:[%s1 + $0x40] sm:$0xff]
  %v23 = vld [vmem:[%s1 + $0x48] sm:$0xff]
  %v24 = vld [vmem:[%s1 + $0x50] sm:$0xff]
  %v25 = vld [vmem:[%s1 + $0x58] sm:$0xff]
  %v26 = vld [vmem:[%s1 + $0x60] sm:$0xff]
  %v27 = vld [vmem:[%s1 + $0x68] sm:$0xff]
  %v28 = vld [vmem:[%s1 + $0x70] sm:$0xff]
  %v29 = vld [vmem:[%s1 + $0x78] sm:$0xff]
  %v30 = vld [vmem:[%s1 + $0x80] sm:$0xff]
  %v31 = vld [vmem:[%s1 + $0x88] sm:$0xff]
  %v32 = vld [vmem:[%s1 + $0x90] sm:$0xff]
  %v33 = vld [vmem:[%s1 + $0x98] sm:$0xff]
  %v34 = vld [vmem:[%s1 + $0xa0] sm:$0xff]
  %v35 = vld [vmem:[%s1 + $0xa8] sm:$0xff]
  %v36 = vld [vmem:[%s1 + $0xb0] sm:$0xff]
  %v37 = vld [vmem:[%s1 + $0xb8] sm:$0xff]
  %v38 = vld [vmem:[%s1 + $0xc0] sm:$0xff]
  %v39 = vld [vmem:[%s1 + $0xc8] sm:$0xff]
  %v40 = vld [vmem:[%s1 + $0xd0] sm:$0xff]
  %v41 = vld [vmem:[%s1 + $0xd8] sm:$0xff]
  %v42 = vld [vmem:[%s1 + $0xe0] sm:$0xff]
  %v43 = vld [vmem:[%s1 + $0xe8] sm:$0xff]
  %v44 = vld [vmem:[%s1 + $0xf0] sm:$0xff]
  %v45 = vld [vmem:[%s1 + $0xf8] sm:$0xff]
  %v46 = vld [vmem:[%s1 + $0x100] sm:$0xff]
  %v47 = vld [vmem:[%s1 + $0x108] sm:$0xff]
  %v48 = vld [vmem:[%s1 + $0x110] sm:$0xff]
  %v49 = vld [vmem:[%s1 + $0x118] sm:$0xff]
  %v50 = vld [vmem:[%s1 + $0x120] sm:$0xff]
  %v51 = vld [vmem:[%s1 + $0x128] sm:$0xff]
  %v52 = vld [vmem:[%s1 + $0x130] sm:$0xff]
  %v53 = vld [vmem:[%s1 + $0x138] sm:$0xff]
  %v54 = vld [vmem:[%s1 + $0x140] sm:$0xff]
  %v55 = vld [vmem:[%s1 + $0x148] sm:$0xff]
  %v56 = vld [vmem:[%s1 + $0x150] sm:$0xff]
  %v57 = vld [vmem:[%s1 + $0x158] sm:$0xff]
  %v58 = vld [vmem:[%s1 + $0x160] sm:$0xff]
  %v59 = vld [vmem:[%s1 + $0x168] sm:$0xff]
  %v60 = vld [vmem:[%s1 + $0x170] sm:$0xff]
  %v61 = vld [vmem:[%s1 + $0x178] sm:$0xff]
  %v62 = vld [vmem:[%s1 + $0x180] sm:$0xff]
  %v63 = vld [vmem:[%s1 + $0x188] sm:$0xff]
  %v64 = vld [vmem:[%s1 + $0x190] sm:$0xff]
  %v65 = vld [vmem:[%s1 + $0x198] sm:$0xff]
  %v66 = vld [vmem:[%s1 + $0x1a0] sm:$0xff]
  %v67 = vld [vmem:[%s1 + $0x1a8] sm:$0xff]
  %v68 = vld [vmem:[%s1 + $0x1b0] sm:$0xff]
  %v69 = vld [vmem:[%s1 + $0x1b8] sm:$0xff]
  %v70 = vld [vmem:[%s1 + $0x1c0] sm:$0xff]
  %v71 = vld [vmem:[%s1 + $0x1c8] sm:$0xff]
  %v72 = vld [vmem:[%s1 + $0x1d0] sm:$0xff]
  %v73 = vld [vmem:[%s1 + $0x1d8] sm:$0xff]
  %v74 = vld [vmem:[%s1 + $0x1e0] sm:$0xff]
  %v75 = vld [vmem:[%s1 + $0x1e8] sm:$0xff]
  %v76 = vld [vmem:[%s1 + $0x1f0] sm:$0xff]
  %v77 = vld [vmem:[%s1 + $0x1f8] sm:$0xff]
  %v78 = vld [vmem:[%s2] sm:$0x3]
  %v79 = vld [vmem:[%s0] sm:$0xff]
  %80 = vmatpush.msra.mxu0 %v74
  %81 = vmatpush.msra.mxu0 %v70
  %82 = vmatpush.msra.mxu0 %v66
  %83 = vmatpush.msra.mxu0 %v62
  %84 = vmatpush.msra.mxu0 %v58
  %85 = vmatpush.msra.mxu0 %v54
  %86 = vmatpush.msra.mxu0 %v50
  %87 = vmatpush.msra.mxu0 %v46
  %88 = vmatpush.msra.mxu0 %v42
  %89 = vmatpush.msra.mxu0 %v38
  %90 = vmatpush.msra.mxu0 %v34
  %91 = vmatpush.msra.mxu0 %v30
  %92 = vmatpush.msra.mxu0 %v26
  %93 = vmatpush.msra.mxu0 %v22
  %94 = vmatpush.msra.mxu0 %v18
  %95 = vmatpush.msra.mxu0 %v14
  %96 = vmatmul.f32.gmra.mxu0 %v78
  %v97 = vpop.f32.mrf.mxu0
  %v98 = vadd.f32 0.0, %v97
  %99 = vdwg.mxu0
  %100 = vmatpush.msra.mxu0 %v75
  %101 = vmatpush.msra.mxu0 %v71
  %102 = vmatpush.msra.mxu0 %v67
  %103 = vmatpush.msra.mxu0 %v63
  %104 = vmatpush.msra.mxu0 %v59
  %105 = vmatpush.msra.mxu0 %v55
  %106 = vmatpush.msra.mxu0 %v51
  %107 = vmatpush.msra.mxu0 %v47
  %108 = vmatpush.msra.mxu0 %v43
  %109 = vmatpush.msra.mxu0 %v39
  %110 = vmatpush.msra.mxu0 %v35
  %111 = vmatpush.msra.mxu0 %v31
  %112 = vmatpush.msra.mxu0 %v27
  %113 = vmatpush.msra.mxu0 %v23
  %114 = vmatpush.msra.mxu0 %v19
  %115 = vmatpush.msra.mxu0 %v15
  %116 = vmatmul.f32.gmra.mxu0 %v78
  %v117 = vpop.f32.mrf.mxu0
  %v118 = vadd.f32 0.0, %v117
  %119 = vdwg.mxu0
  %120 = vmatpush.msra.mxu0 %v76
  %121 = vmatpush.msra.mxu0 %v72
  %122 = vmatpush.msra.mxu0 %v68
  %123 = vmatpush.msra.mxu0 %v64
  %124 = vmatpush.msra.mxu0 %v60
  %125 = vmatpush.msra.mxu0 %v56
  %126 = vmatpush.msra.mxu0 %v52
  %127 = vmatpush.msra.mxu0 %v48
  %128 = vmatpush.msra.mxu0 %v44
  %129 = vmatpush.msra.mxu0 %v40
  %130 = vmatpush.msra.mxu0 %v36
  %131 = vmatpush.msra.mxu0 %v32
  %132 = vmatpush.msra.mxu0 %v28
  %133 = vmatpush.msra.mxu0 %v24
  %134 = vmatpush.msra.mxu0 %v20
  %135 = vmatpush.msra.mxu0 %v16
  %136 = vmatmul.f32.gmra.mxu0 %v78
  %v137 = vpop.f32.mrf.mxu0
  %v138 = vadd.f32 0.0, %v137
  %139 = vdwg.mxu0
  %140 = vmatpush.msra.mxu0 %v77
  %141 = vmatpush.msra.mxu0 %v73
  %142 = vmatpush.msra.mxu0 %v69
  %143 = vmatpush.msra.mxu0 %v65
  %144 = vmatpush.msra.mxu0 %v61
  %145 = vmatpush.msra.mxu0 %v57
  %146 = vmatpush.msra.mxu0 %v53
  %147 = vmatpush.msra.mxu0 %v49
  %148 = vmatpush.msra.mxu0 %v45
  %149 = vmatpush.msra.mxu0 %v41
  %150 = vmatpush.msra.mxu0 %v37
  %151 = vmatpush.msra.mxu0 %v33
  %152 = vmatpush.msra.mxu0 %v29
  %153 = vmatpush.msra.mxu0 %v25
  %154 = vmatpush.msra.mxu0 %v21
  %155 = vmatpush.msra.mxu0 %v17
  %156 = vmatmul.f32.gmra.mxu0 %v78
  %v157 = vpop.f32.mrf.mxu0
  %v158 = vadd.f32 0.0, %v157
  %159 = vdwg.mxu0
  %v164 = vrot.slane %v118, 6
  %v165 = vrot.slane %v138, 4
  %v166 = vrot.slane %v158, 2
  %vm167 = vcmask 1041408
  %v168 = vsel %vm167, %v98, %v164
  %vm169 = vcmask 1045508
  %v170 = vsel %vm169, %v165, %v166
  %vm171 = vcmask 1043456
  %v172 = vsel %vm171, %v168, %v170
  %v174 = vadd.f32 %v79, %v172
  %v175 = vxor.u32 %v174, 2147483648
  %v176 = vmul.f32 %v175, 1.442695
  %v177 = vpow.pop %v176
  %v178 = vadd.f32 %v177, 1.0
  %v179 = vrcp.pop %v178
  %v180 = vmul.f32 %v178, %v179
  %v181 = vsub.f32 1.0, %v180
  %v182 = vmul.f32 %v179, %v181
  %v183 = vadd.f32 %v179, %v182
  %vm184 = vweird.f32 %v178
  %vm185 = vweird.f32 %v179
  %vm186 = vmor %vm184, %vm185
  %v187 = vsel %vm186, %v179, %v183
  %v188 = vand.u32 2147483647, %v178
  %vm189 = vcmp.eq.f32.partialorder %v188, 8.507059e+37
  %v190 = vand.u32 %v178, 2147483648
  %v191 = vor.u32 1.1754944e-38, %v190
  %v192 = vsel %vm189, %v191, %v187
  %v193 = vmul.f32 1.0, %v192
  %v195 = vrot.slane %v174, 6
  %v197 = vtanh.pop %v195
  %v199 = vrot.slane %v193, 2
  %v201 = vmul.f32 %v199, 0.0
  %v202 = vmul.f32 %v193, %v197
  %v203 = vadd.f32 %v201, %v202
  %v204 = vtanh.pop %v203
  %v205 = vrot.slane %v193, 4
  %v207 = vmul.f32 %v205, %v204
  %208 = vst [vmem:[%s3] sm:$0x3] %v207
  %s209 = scalar_lea.vmem %s0, 8
  %v210 = vld [vmem:[%s209] sm:$0xff]
  %211 = vmatpush.msra.mxu0 %v74
  %212 = vmatpush.msra.mxu0 %v70
  %213 = vmatpush.msra.mxu0 %v66
  %214 = vmatpush.msra.mxu0 %v62
  %215 = vmatpush.msra.mxu0 %v58
  %216 = vmatpush.msra.mxu0 %v54
  %217 = vmatpush.msra.mxu0 %v50
  %218 = vmatpush.msra.mxu0 %v46
  %219 = vmatpush.msra.mxu0 %v42
  %220 = vmatpush.msra.mxu0 %v38
  %221 = vmatpush.msra.mxu0 %v34
  %222 = vmatpush.msra.mxu0 %v30
  %223 = vmatpush.msra.mxu0 %v26
  %224 = vmatpush.msra.mxu0 %v22
  %225 = vmatpush.msra.mxu0 %v18
  %226 = vmatpush.msra.mxu0 %v14
  %227 = vmatmul.f32.gmra.mxu0 %v207
  %v228 = vpop.f32.mrf.mxu0
  %v229 = vadd.f32 0.0, %v228
  %230 = vdwg.mxu0
  %231 = vmatpush.msra.mxu0 %v75
  %232 = vmatpush.msra.mxu0 %v71
  %233 = vmatpush.msra.mxu0 %v67
  %234 = vmatpush.msra.mxu0 %v63
  %235 = vmatpush.msra.mxu0 %v59
  %236 = vmatpush.msra.mxu0 %v55
  %237 = vmatpush.msra.mxu0 %v51
  %238 = vmatpush.msra.mxu0 %v47
  %239 = vmatpush.msra.mxu0 %v43
  %240 = vmatpush.msra.mxu0 %v39
  %241 = vmatpush.msra.mxu0 %v35
  %242 = vmatpush.msra.mxu0 %v31
  %243 = vmatpush.msra.mxu0 %v27
  %244 = vmatpush.msra.mxu0 %v23
  %245 = vmatpush.msra.mxu0 %v19
  %246 = vmatpush.msra.mxu0 %v15
  %247 = vmatmul.f32.gmra.mxu0 %v207
  %v248 = vpop.f32.mrf.mxu0
  %v249 = vadd.f32 0.0, %v248
  %250 = vdwg.mxu0
  %251 = vmatpush.msra.mxu0 %v76
  %252 = vmatpush.msra.mxu0 %v72
  %253 = vmatpush.msra.mxu0 %v68
  %254 = vmatpush.msra.mxu0 %v64
  %255 = vmatpush.msra.mxu0 %v60
  %256 = vmatpush.msra.mxu0 %v56
  %257 = vmatpush.msra.mxu0 %v52
  %258 = vmatpush.msra.mxu0 %v48
  %259 = vmatpush.msra.mxu0 %v44
  %260 = vmatpush.msra.mxu0 %v40
  %261 = vmatpush.msra.mxu0 %v36
  %262 = vmatpush.msra.mxu0 %v32
  %263 = vmatpush.msra.mxu0 %v28
  %264 = vmatpush.msra.mxu0 %v24
  %265 = vmatpush.msra.mxu0 %v20
  %266 = vmatpush.msra.mxu0 %v16
  %267 = vmatmul.f32.gmra.mxu0 %v207
  %v268 = vpop.f32.mrf.mxu0
  %v269 = vadd.f32 0.0, %v268
  %270 = vdwg.mxu0
  %271 = vmatpush.msra.mxu0 %v77
  %272 = vmatpush.msra.mxu0 %v73
  %273 = vmatpush.msra.mxu0 %v69
  %274 = vmatpush.msra.mxu0 %v65
  %275 = vmatpush.msra.mxu0 %v61
  %276 = vmatpush.msra.mxu0 %v57
  %277 = vmatpush.msra.mxu0 %v53
  %278 = vmatpush.msra.mxu0 %v49
  %279 = vmatpush.msra.mxu0 %v45
  %280 = vmatpush.msra.mxu0 %v41
  %281 = vmatpush.msra.mxu0 %v37
  %282 = vmatpush.msra.mxu0 %v33
  %283 = vmatpush.msra.mxu0 %v29
  %284 = vmatpush.msra.mxu0 %v25
  %285 = vmatpush.msra.mxu0 %v21
  %286 = vmatpush.msra.mxu0 %v17
  %287 = vmatmul.f32.gmra.mxu0 %v207
  %v288 = vpop.f32.mrf.mxu0
  %v289 = vadd.f32 0.0, %v288
  %290 = vdwg.mxu0
  %v295 = vrot.slane %v249, 6
  %v296 = vrot.slane %v269, 4
  %v297 = vrot.slane %v289, 2
  %v298 = vsel %vm167, %v229, %v295
  %v299 = vsel %vm169, %v296, %v297
  %v300 = vsel %vm171, %v298, %v299
  %v302 = vadd.f32 %v210, %v300
  %v303 = vxor.u32 %v302, 2147483648
  %v304 = vmul.f32 %v303, 1.442695
  %v305 = vpow.pop %v304
  %v306 = vadd.f32 %v305, 1.0
  %v307 = vrcp.pop %v306
  %v308 = vmul.f32 %v306, %v307
  %v309 = vsub.f32 1.0, %v308
  %v310 = vmul.f32 %v307, %v309
  %v311 = vadd.f32 %v307, %v310
  %vm312 = vweird.f32 %v306
  %vm313 = vweird.f32 %v307
  %vm314 = vmor %vm312, %vm313
  %v315 = vsel %vm314, %v307, %v311
  %v316 = vand.u32 2147483647, %v306
  %vm317 = vcmp.eq.f32.partialorder %v316, 8.507059e+37
  %v318 = vand.u32 %v306, 2147483648
  %v319 = vor.u32 1.1754944e-38, %v318
  %v320 = vsel %vm317, %v319, %v315
  %v321 = vmul.f32 1.0, %v320
  %v323 = vrot.slane %v302, 6
  %v325 = vtanh.pop %v323
  %v327 = vrot.slane %v321, 2
  %v329 = vmul.f32 %v327, %v203
  %v330 = vmul.f32 %v321, %v325
  %v331 = vadd.f32 %v329, %v330
  %v332 = vtanh.pop %v331
  %v333 = vrot.slane %v321, 4
  %v335 = vmul.f32 %v333, %v332
  %s336 = scalar_lea.vmem %s3, 2
  %337 = vst [vmem:[%s336] sm:$0x3] %v335
  %s338 = scalar_lea.vmem %s0, 16
  %v339 = vld [vmem:[%s338] sm:$0xff]
  %340 = vmatpush.msra.mxu0 %v74
  %341 = vmatpush.msra.mxu0 %v70
  %342 = vmatpush.msra.mxu0 %v66
  %343 = vmatpush.msra.mxu0 %v62
  %344 = vmatpush.msra.mxu0 %v58
  %345 = vmatpush.msra.mxu0 %v54
  %346 = vmatpush.msra.mxu0 %v50
  %347 = vmatpush.msra.mxu0 %v46
  %348 = vmatpush.msra.mxu0 %v42
  %349 = vmatpush.msra.mxu0 %v38
  %350 = vmatpush.msra.mxu0 %v34
  %351 = vmatpush.msra.mxu0 %v30
  %352 = vmatpush.msra.mxu0 %v26
  %353 = vmatpush.msra.mxu0 %v22
  %354 = vmatpush.msra.mxu0 %v18
  %355 = vmatpush.msra.mxu0 %v14
  %356 = vmatmul.f32.gmra.mxu0 %v335
  %v357 = vpop.f32.mrf.mxu0
  %v358 = vadd.f32 0.0, %v357
  %359 = vdwg.mxu0
  %360 = vmatpush.msra.mxu0 %v75
  %361 = vmatpush.msra.mxu0 %v71
  %362 = vmatpush.msra.mxu0 %v67
  %363 = vmatpush.msra.mxu0 %v63
  %364 = vmatpush.msra.mxu0 %v59
  %365 = vmatpush.msra.mxu0 %v55
  %366 = vmatpush.msra.mxu0 %v51
  %367 = vmatpush.msra.mxu0 %v47
  %368 = vmatpush.msra.mxu0 %v43
  %369 = vmatpush.msra.mxu0 %v39
  %370 = vmatpush.msra.mxu0 %v35
  %371 = vmatpush.msra.mxu0 %v31
  %372 = vmatpush.msra.mxu0 %v27
  %373 = vmatpush.msra.mxu0 %v23
  %374 = vmatpush.msra.mxu0 %v19
  %375 = vmatpush.msra.mxu0 %v15
  %376 = vmatmul.f32.gmra.mxu0 %v335
  %v377 = vpop.f32.mrf.mxu0
  %v378 = vadd.f32 0.0, %v377
  %379 = vdwg.mxu0
  %380 = vmatpush.msra.mxu0 %v76
  %381 = vmatpush.msra.mxu0 %v72
  %382 = vmatpush.msra.mxu0 %v68
  %383 = vmatpush.msra.mxu0 %v64
  %384 = vmatpush.msra.mxu0 %v60
  %385 = vmatpush.msra.mxu0 %v56
  %386 = vmatpush.msra.mxu0 %v52
  %387 = vmatpush.msra.mxu0 %v48
  %388 = vmatpush.msra.mxu0 %v44
  %389 = vmatpush.msra.mxu0 %v40
  %390 = vmatpush.msra.mxu0 %v36
  %391 = vmatpush.msra.mxu0 %v32
  %392 = vmatpush.msra.mxu0 %v28
  %393 = vmatpush.msra.mxu0 %v24
  %394 = vmatpush.msra.mxu0 %v20
  %395 = vmatpush.msra.mxu0 %v16
  %396 = vmatmul.f32.gmra.mxu0 %v335
  %v397 = vpop.f32.mrf.mxu0
  %v398 = vadd.f32 0.0, %v397
  %399 = vdwg.mxu0
  %400 = vmatpush.msra.mxu0 %v77
  %401 = vmatpush.msra.mxu0 %v73
  %402 = vmatpush.msra.mxu0 %v69
  %403 = vmatpush.msra.mxu0 %v65
  %404 = vmatpush.msra.mxu0 %v61
  %405 = vmatpush.msra.mxu0 %v57
  %406 = vmatpush.msra.mxu0 %v53
  %407 = vmatpush.msra.mxu0 %v49
  %408 = vmatpush.msra.mxu0 %v45
  %409 = vmatpush.msra.mxu0 %v41
  %410 = vmatpush.msra.mxu0 %v37
  %411 = vmatpush.msra.mxu0 %v33
  %412 = vmatpush.msra.mxu0 %v29
  %413 = vmatpush.msra.mxu0 %v25
  %414 = vmatpush.msra.mxu0 %v21
  %415 = vmatpush.msra.mxu0 %v17
  %416 = vmatmul.f32.gmra.mxu0 %v335
  %v417 = vpop.f32.mrf.mxu0
  %v418 = vadd.f32 0.0, %v417
  %419 = vdwg.mxu0
  %v424 = vrot.slane %v378, 6
  %v425 = vrot.slane %v398, 4
  %v426 = vrot.slane %v418, 2
  %v427 = vsel %vm167, %v358, %v424
  %v428 = vsel %vm169, %v425, %v426
  %v429 = vsel %vm171, %v427, %v428
  %v431 = vadd.f32 %v339, %v429
  %v432 = vxor.u32 %v431, 2147483648
  %v433 = vmul.f32 %v432, 1.442695
  %v434 = vpow.pop %v433
  %v435 = vadd.f32 %v434, 1.0
  %v436 = vrcp.pop %v435
  %v437 = vmul.f32 %v435, %v436
  %v438 = vsub.f32 1.0, %v437
  %v439 = vmul.f32 %v436, %v438
  %v440 = vadd.f32 %v436, %v439
  %vm441 = vweird.f32 %v435
  %vm442 = vweird.f32 %v436
  %vm443 = vmor %vm441, %vm442
  %v444 = vsel %vm443, %v436, %v440
  %v445 = vand.u32 2147483647, %v435
  %vm446 = vcmp.eq.f32.partialorder %v445, 8.507059e+37
  %v447 = vand.u32 %v435, 2147483648
  %v448 = vor.u32 1.1754944e-38, %v447
  %v449 = vsel %vm446, %v448, %v444
  %v450 = vmul.f32 1.0, %v449
  %v452 = vrot.slane %v431, 6
  %v454 = vtanh.pop %v452
  %v456 = vrot.slane %v450, 2
  %v458 = vmul.f32 %v456, %v331
  %v459 = vmul.f32 %v450, %v454
  %v460 = vadd.f32 %v458, %v459
  %v461 = vtanh.pop %v460
  %v462 = vrot.slane %v450, 4
  %v464 = vmul.f32 %v462, %v461
  %s465 = scalar_lea.vmem %s3, 4
  %466 = vst [vmem:[%s465] sm:$0x3] %v464
  %s467 = scalar_lea.vmem %s0, 24
  %v468 = vld [vmem:[%s467] sm:$0xff]
  %469 = vmatpush.msra.mxu0 %v74
  %470 = vmatpush.msra.mxu0 %v70
  %471 = vmatpush.msra.mxu0 %v66
  %472 = vmatpush.msra.mxu0 %v62
  %473 = vmatpush.msra.mxu0 %v58
  %474 = vmatpush.msra.mxu0 %v54
  %475 = vmatpush.msra.mxu0 %v50
  %476 = vmatpush.msra.mxu0 %v46
  %477 = vmatpush.msra.mxu0 %v42
  %478 = vmatpush.msra.mxu0 %v38
  %479 = vmatpush.msra.mxu0 %v34
  %480 = vmatpush.msra.mxu0 %v30
  %481 = vmatpush.msra.mxu0 %v26
  %482 = vmatpush.msra.mxu0 %v22
  %483 = vmatpush.msra.mxu0 %v18
  %484 = vmatpush.msra.mxu0 %v14
  %485 = vmatmul.f32.gmra.mxu0 %v464
  %v486 = vpop.f32.mrf.mxu0
  %v487 = vadd.f32 0.0, %v486
  %488 = vdwg.mxu0
  %489 = vmatpush.msra.mxu0 %v75
  %490 = vmatpush.msra.mxu0 %v71
  %491 = vmatpush.msra.mxu0 %v67
  %492 = vmatpush.msra.mxu0 %v63
  %493 = vmatpush.msra.mxu0 %v59
  %494 = vmatpush.msra.mxu0 %v55
  %495 = vmatpush.msra.mxu0 %v51
  %496 = vmatpush.msra.mxu0 %v47
  %497 = vmatpush.msra.mxu0 %v43
  %498 = vmatpush.msra.mxu0 %v39
  %499 = vmatpush.msra.mxu0 %v35
  %500 = vmatpush.msra.mxu0 %v31
  %501 = vmatpush.msra.mxu0 %v27
  %502 = vmatpush.msra.mxu0 %v23
  %503 = vmatpush.msra.mxu0 %v19
  %504 = vmatpush.msra.mxu0 %v15
  %505 = vmatmul.f32.gmra.mxu0 %v464
  %v506 = vpop.f32.mrf.mxu0
  %v507 = vadd.f32 0.0, %v506
  %508 = vdwg.mxu0
  %509 = vmatpush.msra.mxu0 %v76
  %510 = vmatpush.msra.mxu0 %v72
  %511 = vmatpush.msra.mxu0 %v68
  %512 = vmatpush.msra.mxu0 %v64
  %513 = vmatpush.msra.mxu0 %v60
  %514 = vmatpush.msra.mxu0 %v56
  %515 = vmatpush.msra.mxu0 %v52
  %516 = vmatpush.msra.mxu0 %v48
  %517 = vmatpush.msra.mxu0 %v44
  %518 = vmatpush.msra.mxu0 %v40
  %519 = vmatpush.msra.mxu0 %v36
  %520 = vmatpush.msra.mxu0 %v32
  %521 = vmatpush.msra.mxu0 %v28
  %522 = vmatpush.msra.mxu0 %v24
  %523 = vmatpush.msra.mxu0 %v20
  %524 = vmatpush.msra.mxu0 %v16
  %525 = vmatmul.f32.gmra.mxu0 %v464
  %v526 = vpop.f32.mrf.mxu0
  %v527 = vadd.f32 0.0, %v526
  %528 = vdwg.mxu0
  %529 = vmatpush.msra.mxu0 %v77
  %530 = vmatpush.msra.mxu0 %v73
  %531 = vmatpush.msra.mxu0 %v69
  %532 = vmatpush.msra.mxu0 %v65
  %533 = vmatpush.msra.mxu0 %v61
  %534 = vmatpush.msra.mxu0 %v57
  %535 = vmatpush.msra.mxu0 %v53
  %536 = vmatpush.msra.mxu0 %v49
  %537 = vmatpush.msra.mxu0 %v45
  %538 = vmatpush.msra.mxu0 %v41
  %539 = vmatpush.msra.mxu0 %v37
  %540 = vmatpush.msra.mxu0 %v33
  %541 = vmatpush.msra.mxu0 %v29
  %542 = vmatpush.msra.mxu0 %v25
  %543 = vmatpush.msra.mxu0 %v21
  %544 = vmatpush.msra.mxu0 %v17
  %545 = vmatmul.f32.gmra.mxu0 %v464
  %v546 = vpop.f32.mrf.mxu0
  %v547 = vadd.f32 0.0, %v546
  %548 = vdwg.mxu0
  %v553 = vrot.slane %v507, 6
  %v554 = vrot.slane %v527, 4
  %v555 = vrot.slane %v547, 2
  %v556 = vsel %vm167, %v487, %v553
  %v557 = vsel %vm169, %v554, %v555
  %v558 = vsel %vm171, %v556, %v557
  %v560 = vadd.f32 %v468, %v558
  %v561 = vxor.u32 %v560, 2147483648
  %v562 = vmul.f32 %v561, 1.442695
  %v563 = vpow.pop %v562
  %v564 = vadd.f32 %v563, 1.0
  %v565 = vrcp.pop %v564
  %v566 = vmul.f32 %v564, %v565
  %v567 = vsub.f32 1.0, %v566
  %v568 = vmul.f32 %v565, %v567
  %v569 = vadd.f32 %v565, %v568
  %vm570 = vweird.f32 %v564
  %vm571 = vweird.f32 %v565
  %vm572 = vmor %vm570, %vm571
  %v573 = vsel %vm572, %v565, %v569
  %v574 = vand.u32 2147483647, %v564
  %vm575 = vcmp.eq.f32.partialorder %v574, 8.507059e+37
  %v576 = vand.u32 %v564, 2147483648
  %v577 = vor.u32 1.1754944e-38, %v576
  %v578 = vsel %vm575, %v577, %v573
  %v579 = vmul.f32 1.0, %v578
  %v581 = vrot.slane %v560, 6
  %v583 = vtanh.pop %v581
  %v585 = vrot.slane %v579, 2
  %v587 = vmul.f32 %v585, %v460
  %v588 = vmul.f32 %v579, %v583
  %v589 = vadd.f32 %v587, %v588
  %v590 = vtanh.pop %v589
  %v591 = vrot.slane %v579, 4
  %v593 = vmul.f32 %v591, %v590
  %s594 = scalar_lea.vmem %s3, 6
  %595 = vst [vmem:[%s594] sm:$0x3] %v593
  %s596 = scalar_lea.vmem %s0, 32
  %v597 = vld [vmem:[%s596] sm:$0xff]
  %598 = vmatpush.msra.mxu0 %v74
  %599 = vmatpush.msra.mxu0 %v70
  %600 = vmatpush.msra.mxu0 %v66
  %601 = vmatpush.msra.mxu0 %v62
  %602 = vmatpush.msra.mxu0 %v58
  %603 = vmatpush.msra.mxu0 %v54
  %604 = vmatpush.msra.mxu0 %v50
  %605 = vmatpush.msra.mxu0 %v46
  %606 = vmatpush.msra.mxu0 %v42
  %607 = vmatpush.msra.mxu0 %v38
  %608 = vmatpush.msra.mxu0 %v34
  %609 = vmatpush.msra.mxu0 %v30
  %610 = vmatpush.msra.mxu0 %v26
  %611 = vmatpush.msra.mxu0 %v22
  %612 = vmatpush.msra.mxu0 %v18
  %613 = vmatpush.msra.mxu0 %v14
  %614 = vmatmul.f32.gmra.mxu0 %v593
  %v615 = vpop.f32.mrf.mxu0
  %v616 = vadd.f32 0.0, %v615
  %617 = vdwg.mxu0
  %618 = vmatpush.msra.mxu0 %v75
  %619 = vmatpush.msra.mxu0 %v71
  %620 = vmatpush.msra.mxu0 %v67
  %621 = vmatpush.msra.mxu0 %v63
  %622 = vmatpush.msra.mxu0 %v59
  %623 = vmatpush.msra.mxu0 %v55
  %624 = vmatpush.msra.mxu0 %v51
  %625 = vmatpush.msra.mxu0 %v47
  %626 = vmatpush.msra.mxu0 %v43
  %627 = vmatpush.msra.mxu0 %v39
  %628 = vmatpush.msra.mxu0 %v35
  %629 = vmatpush.msra.mxu0 %v31
  %630 = vmatpush.msra.mxu0 %v27
  %631 = vmatpush.msra.mxu0 %v23
  %632 = vmatpush.msra.mxu0 %v19
  %633 = vmatpush.msra.mxu0 %v15
  %634 = vmatmul.f32.gmra.mxu0 %v593
  %v635 = vpop.f32.mrf.mxu0
  %v636 = vadd.f32 0.0, %v635
  %637 = vdwg.mxu0
  %638 = vmatpush.msra.mxu0 %v76
  %639 = vmatpush.msra.mxu0 %v72
  %640 = vmatpush.msra.mxu0 %v68
  %641 = vmatpush.msra.mxu0 %v64
  %642 = vmatpush.msra.mxu0 %v60
  %643 = vmatpush.msra.mxu0 %v56
  %644 = vmatpush.msra.mxu0 %v52
  %645 = vmatpush.msra.mxu0 %v48
  %646 = vmatpush.msra.mxu0 %v44
  %647 = vmatpush.msra.mxu0 %v40
  %648 = vmatpush.msra.mxu0 %v36
  %649 = vmatpush.msra.mxu0 %v32
  %650 = vmatpush.msra.mxu0 %v28
  %651 = vmatpush.msra.mxu0 %v24
  %652 = vmatpush.msra.mxu0 %v20
  %653 = vmatpush.msra.mxu0 %v16
  %654 = vmatmul.f32.gmra.mxu0 %v593
  %v655 = vpop.f32.mrf.mxu0
  %v656 = vadd.f32 0.0, %v655
  %657 = vdwg.mxu0
  %658 = vmatpush.msra.mxu0 %v77
  %659 = vmatpush.msra.mxu0 %v73
  %660 = vmatpush.msra.mxu0 %v69
  %661 = vmatpush.msra.mxu0 %v65
  %662 = vmatpush.msra.mxu0 %v61
  %663 = vmatpush.msra.mxu0 %v57
  %664 = vmatpush.msra.mxu0 %v53
  %665 = vmatpush.msra.mxu0 %v49
  %666 = vmatpush.msra.mxu0 %v45
  %667 = vmatpush.msra.mxu0 %v41
  %668 = vmatpush.msra.mxu0 %v37
  %669 = vmatpush.msra.mxu0 %v33
  %670 = vmatpush.msra.mxu0 %v29
  %671 = vmatpush.msra.mxu0 %v25
  %672 = vmatpush.msra.mxu0 %v21
  %673 = vmatpush.msra.mxu0 %v17
  %674 = vmatmul.f32.gmra.mxu0 %v593
  %v675 = vpop.f32.mrf.mxu0
  %v676 = vadd.f32 0.0, %v675
  %677 = vdwg.mxu0
  %v682 = vrot.slane %v636, 6
  %v683 = vrot.slane %v656, 4
  %v684 = vrot.slane %v676, 2
  %v685 = vsel %vm167, %v616, %v682
  %v686 = vsel %vm169, %v683, %v684
  %v687 = vsel %vm171, %v685, %v686
  %v689 = vadd.f32 %v597, %v687
  %v690 = vxor.u32 %v689, 2147483648
  %v691 = vmul.f32 %v690, 1.442695
  %v692 = vpow.pop %v691
  %v693 = vadd.f32 %v692, 1.0
  %v694 = vrcp.pop %v693
  %v695 = vmul.f32 %v693, %v694
  %v696 = vsub.f32 1.0, %v695
  %v697 = vmul.f32 %v694, %v696
  %v698 = vadd.f32 %v694, %v697
  %vm699 = vweird.f32 %v693
  %vm700 = vweird.f32 %v694
  %vm701 = vmor %vm699, %vm700
  %v702 = vsel %vm701, %v694, %v698
  %v703 = vand.u32 2147483647, %v693
  %vm704 = vcmp.eq.f32.partialorder %v703, 8.507059e+37
  %v705 = vand.u32 %v693, 2147483648
  %v706 = vor.u32 1.1754944e-38, %v705
  %v707 = vsel %vm704, %v706, %v702
  %v708 = vmul.f32 1.0, %v707
  %v710 = vrot.slane %v689, 6
  %v712 = vtanh.pop %v710
  %v714 = vrot.slane %v708, 2
  %v716 = vmul.f32 %v714, %v589
  %v717 = vmul.f32 %v708, %v712
  %v718 = vadd.f32 %v716, %v717
  %v719 = vtanh.pop %v718
  %v720 = vrot.slane %v708, 4
  %v722 = vmul.f32 %v720, %v719
  %s723 = scalar_lea.vmem %s3, 8
  %724 = vst [vmem:[%s723] sm:$0x3] %v722
  %s725 = scalar_lea.vmem %s0, 40
  %v726 = vld [vmem:[%s725] sm:$0xff]
  %727 = vmatpush.msra.mxu0 %v74
  %728 = vmatpush.msra.mxu0 %v70
  %729 = vmatpush.msra.mxu0 %v66
  %730 = vmatpush.msra.mxu0 %v62
  %731 = vmatpush.msra.mxu0 %v58
  %732 = vmatpush.msra.mxu0 %v54
  %733 = vmatpush.msra.mxu0 %v50
  %734 = vmatpush.msra.mxu0 %v46
  %735 = vmatpush.msra.mxu0 %v42
  %736 = vmatpush.msra.mxu0 %v38
  %737 = vmatpush.msra.mxu0 %v34
  %738 = vmatpush.msra.mxu0 %v30
  %739 = vmatpush.msra.mxu0 %v26
  %740 = vmatpush.msra.mxu0 %v22
  %741 = vmatpush.msra.mxu0 %v18
  %742 = vmatpush.msra.mxu0 %v14
  %743 = vmatmul.f32.gmra.mxu0 %v722
  %v744 = vpop.f32.mrf.mxu0
  %v745 = vadd.f32 0.0, %v744
  %746 = vdwg.mxu0
  %747 = vmatpush.msra.mxu0 %v75
  %748 = vmatpush.msra.mxu0 %v71
  %749 = vmatpush.msra.mxu0 %v67
  %750 = vmatpush.msra.mxu0 %v63
  %751 = vmatpush.msra.mxu0 %v59
  %752 = vmatpush.msra.mxu0 %v55
  %753 = vmatpush.msra.mxu0 %v51
  %754 = vmatpush.msra.mxu0 %v47
  %755 = vmatpush.msra.mxu0 %v43
  %756 = vmatpush.msra.mxu0 %v39
  %757 = vmatpush.msra.mxu0 %v35
  %758 = vmatpush.msra.mxu0 %v31
  %759 = vmatpush.msra.mxu0 %v27
  %760 = vmatpush.msra.mxu0 %v23
  %761 = vmatpush.msra.mxu0 %v19
  %762 = vmatpush.msra.mxu0 %v15
  %763 = vmatmul.f32.gmra.mxu0 %v722
  %v764 = vpop.f32.mrf.mxu0
  %v765 = vadd.f32 0.0, %v764
  %766 = vdwg.mxu0
  %767 = vmatpush.msra.mxu0 %v76
  %768 = vmatpush.msra.mxu0 %v72
  %769 = vmatpush.msra.mxu0 %v68
  %770 = vmatpush.msra.mxu0 %v64
  %771 = vmatpush.msra.mxu0 %v60
  %772 = vmatpush.msra.mxu0 %v56
  %773 = vmatpush.msra.mxu0 %v52
  %774 = vmatpush.msra.mxu0 %v48
  %775 = vmatpush.msra.mxu0 %v44
  %776 = vmatpush.msra.mxu0 %v40
  %777 = vmatpush.msra.mxu0 %v36
  %778 = vmatpush.msra.mxu0 %v32
  %779 = vmatpush.msra.mxu0 %v28
  %780 = vmatpush.msra.mxu0 %v24
  %781 = vmatpush.msra.mxu0 %v20
  %782 = vmatpush.msra.mxu0 %v16
  %783 = vmatmul.f32.gmra.mxu0 %v722
  %v784 = vpop.f32.mrf.mxu0
  %v785 = vadd.f32 0.0, %v784
  %786 = vdwg.mxu0
  %787 = vmatpush.msra.mxu0 %v77
  %788 = vmatpush.msra.mxu0 %v73
  %789 = vmatpush.msra.mxu0 %v69
  %790 = vmatpush.msra.mxu0 %v65
  %791 = vmatpush.msra.mxu0 %v61
  %792 = vmatpush.msra.mxu0 %v57
  %793 = vmatpush.msra.mxu0 %v53
  %794 = vmatpush.msra.mxu0 %v49
  %795 = vmatpush.msra.mxu0 %v45
  %796 = vmatpush.msra.mxu0 %v41
  %797 = vmatpush.msra.mxu0 %v37
  %798 = vmatpush.msra.mxu0 %v33
  %799 = vmatpush.msra.mxu0 %v29
  %800 = vmatpush.msra.mxu0 %v25
  %801 = vmatpush.msra.mxu0 %v21
  %802 = vmatpush.msra.mxu0 %v17
  %803 = vmatmul.f32.gmra.mxu0 %v722
  %v804 = vpop.f32.mrf.mxu0
  %v805 = vadd.f32 0.0, %v804
  %806 = vdwg.mxu0
  %v811 = vrot.slane %v765, 6
  %v812 = vrot.slane %v785, 4
  %v813 = vrot.slane %v805, 2
  %v814 = vsel %vm167, %v745, %v811
  %v815 = vsel %vm169, %v812, %v813
  %v816 = vsel %vm171, %v814, %v815
  %v818 = vadd.f32 %v726, %v816
  %v819 = vxor.u32 %v818, 2147483648
  %v820 = vmul.f32 %v819, 1.442695
  %v821 = vpow.pop %v820
  %v822 = vadd.f32 %v821, 1.0
  %v823 = vrcp.pop %v822
  %v824 = vmul.f32 %v822, %v823
  %v825 = vsub.f32 1.0, %v824
  %v826 = vmul.f32 %v823, %v825
  %v827 = vadd.f32 %v823, %v826
  %vm828 = vweird.f32 %v822
  %vm829 = vweird.f32 %v823
  %vm830 = vmor %vm828, %vm829
  %v831 = vsel %vm830, %v823, %v827
  %v832 = vand.u32 2147483647, %v822
  %vm833 = vcmp.eq.f32.partialorder %v832, 8.507059e+37
  %v834 = vand.u32 %v822, 2147483648
  %v835 = vor.u32 1.1754944e-38, %v834
  %v836 = vsel %vm833, %v835, %v831
  %v837 = vmul.f32 1.0, %v836
  %v839 = vrot.slane %v818, 6
  %v841 = vtanh.pop %v839
  %v843 = vrot.slane %v837, 2
  %v845 = vmul.f32 %v843, %v718
  %v846 = vmul.f32 %v837, %v841
  %v847 = vadd.f32 %v845, %v846
  %v848 = vtanh.pop %v847
  %v849 = vrot.slane %v837, 4
  %v851 = vmul.f32 %v849, %v848
  %s852 = scalar_lea.vmem %s3, 10
  %853 = vst [vmem:[%s852] sm:$0x3] %v851
  %s854 = scalar_lea.vmem %s0, 48
  %v855 = vld [vmem:[%s854] sm:$0xff]
  %856 = vmatpush.msra.mxu0 %v74
  %857 = vmatpush.msra.mxu0 %v70
  %858 = vmatpush.msra.mxu0 %v66
  %859 = vmatpush.msra.mxu0 %v62
  %860 = vmatpush.msra.mxu0 %v58
  %861 = vmatpush.msra.mxu0 %v54
  %862 = vmatpush.msra.mxu0 %v50
  %863 = vmatpush.msra.mxu0 %v46
  %864 = vmatpush.msra.mxu0 %v42
  %865 = vmatpush.msra.mxu0 %v38
  %866 = vmatpush.msra.mxu0 %v34
  %867 = vmatpush.msra.mxu0 %v30
  %868 = vmatpush.msra.mxu0 %v26
  %869 = vmatpush.msra.mxu0 %v22
  %870 = vmatpush.msra.mxu0 %v18
  %871 = vmatpush.msra.mxu0 %v14
  %872 = vmatmul.f32.gmra.mxu0 %v851
  %v873 = vpop.f32.mrf.mxu0
  %v874 = vadd.f32 0.0, %v873
  %875 = vdwg.mxu0
  %876 = vmatpush.msra.mxu0 %v75
  %877 = vmatpush.msra.mxu0 %v71
  %878 = vmatpush.msra.mxu0 %v67
  %879 = vmatpush.msra.mxu0 %v63
  %880 = vmatpush.msra.mxu0 %v59
  %881 = vmatpush.msra.mxu0 %v55
  %882 = vmatpush.msra.mxu0 %v51
  %883 = vmatpush.msra.mxu0 %v47
  %884 = vmatpush.msra.mxu0 %v43
  %885 = vmatpush.msra.mxu0 %v39
  %886 = vmatpush.msra.mxu0 %v35
  %887 = vmatpush.msra.mxu0 %v31
  %888 = vmatpush.msra.mxu0 %v27
  %889 = vmatpush.msra.mxu0 %v23
  %890 = vmatpush.msra.mxu0 %v19
  %891 = vmatpush.msra.mxu0 %v15
  %892 = vmatmul.f32.gmra.mxu0 %v851
  %v893 = vpop.f32.mrf.mxu0
  %v894 = vadd.f32 0.0, %v893
  %895 = vdwg.mxu0
  %896 = vmatpush.msra.mxu0 %v76
  %897 = vmatpush.msra.mxu0 %v72
  %898 = vmatpush.msra.mxu0 %v68
  %899 = vmatpush.msra.mxu0 %v64
  %900 = vmatpush.msra.mxu0 %v60
  %901 = vmatpush.msra.mxu0 %v56
  %902 = vmatpush.msra.mxu0 %v52
  %903 = vmatpush.msra.mxu0 %v48
  %904 = vmatpush.msra.mxu0 %v44
  %905 = vmatpush.msra.mxu0 %v40
  %906 = vmatpush.msra.mxu0 %v36
  %907 = vmatpush.msra.mxu0 %v32
  %908 = vmatpush.msra.mxu0 %v28
  %909 = vmatpush.msra.mxu0 %v24
  %910 = vmatpush.msra.mxu0 %v20
  %911 = vmatpush.msra.mxu0 %v16
  %912 = vmatmul.f32.gmra.mxu0 %v851
  %v913 = vpop.f32.mrf.mxu0
  %v914 = vadd.f32 0.0, %v913
  %915 = vdwg.mxu0
  %916 = vmatpush.msra.mxu0 %v77
  %917 = vmatpush.msra.mxu0 %v73
  %918 = vmatpush.msra.mxu0 %v69
  %919 = vmatpush.msra.mxu0 %v65
  %920 = vmatpush.msra.mxu0 %v61
  %921 = vmatpush.msra.mxu0 %v57
  %922 = vmatpush.msra.mxu0 %v53
  %923 = vmatpush.msra.mxu0 %v49
  %924 = vmatpush.msra.mxu0 %v45
  %925 = vmatpush.msra.mxu0 %v41
  %926 = vmatpush.msra.mxu0 %v37
  %927 = vmatpush.msra.mxu0 %v33
  %928 = vmatpush.msra.mxu0 %v29
  %929 = vmatpush.msra.mxu0 %v25
  %930 = vmatpush.msra.mxu0 %v21
  %931 = vmatpush.msra.mxu0 %v17
  %932 = vmatmul.f32.gmra.mxu0 %v851
  %v933 = vpop.f32.mrf.mxu0
  %v934 = vadd.f32 0.0, %v933
  %935 = vdwg.mxu0
  %v940 = vrot.slane %v894, 6
  %v941 = vrot.slane %v914, 4
  %v942 = vrot.slane %v934, 2
  %v943 = vsel %vm167, %v874, %v940
  %v944 = vsel %vm169, %v941, %v942
  %v945 = vsel %vm171, %v943, %v944
  %v947 = vadd.f32 %v855, %v945
  %v948 = vxor.u32 %v947, 2147483648
  %v949 = vmul.f32 %v948, 1.442695
  %v950 = vpow.pop %v949
  %v951 = vadd.f32 %v950, 1.0
  %v952 = vrcp.pop %v951
  %v953 = vmul.f32 %v951, %v952
  %v954 = vsub.f32 1.0, %v953
  %v955 = vmul.f32 %v952, %v954
  %v956 = vadd.f32 %v952, %v955
  %vm957 = vweird.f32 %v951
  %vm958 = vweird.f32 %v952
  %vm959 = vmor %vm957, %vm958
  %v960 = vsel %vm959, %v952, %v956
  %v961 = vand.u32 2147483647, %v951
  %vm962 = vcmp.eq.f32.partialorder %v961, 8.507059e+37
  %v963 = vand.u32 %v951, 2147483648
  %v964 = vor.u32 1.1754944e-38, %v963
  %v965 = vsel %vm962, %v964, %v960
  %v966 = vmul.f32 1.0, %v965
  %v968 = vrot.slane %v947, 6
  %v970 = vtanh.pop %v968
  %v972 = vrot.slane %v966, 2
  %v974 = vmul.f32 %v972, %v847
  %v975 = vmul.f32 %v966, %v970
  %v976 = vadd.f32 %v974, %v975
  %v977 = vtanh.pop %v976
  %v978 = vrot.slane %v966, 4
  %v980 = vmul.f32 %v978, %v977
  %s981 = scalar_lea.vmem %s3, 12
  %982 = vst [vmem:[%s981] sm:$0x3] %v980
  %s983 = scalar_lea.vmem %s0, 56
  %v984 = vld [vmem:[%s983] sm:$0xff]
  %985 = vmatpush.msra.mxu0 %v74
  %986 = vmatpush.msra.mxu0 %v70
  %987 = vmatpush.msra.mxu0 %v66
  %988 = vmatpush.msra.mxu0 %v62
  %989 = vmatpush.msra.mxu0 %v58
  %990 = vmatpush.msra.mxu0 %v54
  %991 = vmatpush.msra.mxu0 %v50
  %992 = vmatpush.msra.mxu0 %v46
  %993 = vmatpush.msra.mxu0 %v42
  %994 = vmatpush.msra.mxu0 %v38
  %995 = vmatpush.msra.mxu0 %v34
  %996 = vmatpush.msra.mxu0 %v30
  %997 = vmatpush.msra.mxu0 %v26
  %998 = vmatpush.msra.mxu0 %v22
  %999 = vmatpush.msra.mxu0 %v18
  %1000 = vmatpush.msra.mxu0 %v14
  %1001 = vmatmul.f32.gmra.mxu0 %v980
  %v1002 = vpop.f32.mrf.mxu0
  %v1003 = vadd.f32 0.0, %v1002
  %1004 = vdwg.mxu0
  %1005 = vmatpush.msra.mxu0 %v75
  %1006 = vmatpush.msra.mxu0 %v71
  %1007 = vmatpush.msra.mxu0 %v67
  %1008 = vmatpush.msra.mxu0 %v63
  %1009 = vmatpush.msra.mxu0 %v59
  %1010 = vmatpush.msra.mxu0 %v55
  %1011 = vmatpush.msra.mxu0 %v51
  %1012 = vmatpush.msra.mxu0 %v47
  %1013 = vmatpush.msra.mxu0 %v43
  %1014 = vmatpush.msra.mxu0 %v39
  %1015 = vmatpush.msra.mxu0 %v35
  %1016 = vmatpush.msra.mxu0 %v31
  %1017 = vmatpush.msra.mxu0 %v27
  %1018 = vmatpush.msra.mxu0 %v23
  %1019 = vmatpush.msra.mxu0 %v19
  %1020 = vmatpush.msra.mxu0 %v15
  %1021 = vmatmul.f32.gmra.mxu0 %v980
  %v1022 = vpop.f32.mrf.mxu0
  %v1023 = vadd.f32 0.0, %v1022
  %1024 = vdwg.mxu0
  %1025 = vmatpush.msra.mxu0 %v76
  %1026 = vmatpush.msra.mxu0 %v72
  %1027 = vmatpush.msra.mxu0 %v68
  %1028 = vmatpush.msra.mxu0 %v64
  %1029 = vmatpush.msra.mxu0 %v60
  %1030 = vmatpush.msra.mxu0 %v56
  %1031 = vmatpush.msra.mxu0 %v52
  %1032 = vmatpush.msra.mxu0 %v48
  %1033 = vmatpush.msra.mxu0 %v44
  %1034 = vmatpush.msra.mxu0 %v40
  %1035 = vmatpush.msra.mxu0 %v36
  %1036 = vmatpush.msra.mxu0 %v32
  %1037 = vmatpush.msra.mxu0 %v28
  %1038 = vmatpush.msra.mxu0 %v24
  %1039 = vmatpush.msra.mxu0 %v20
  %1040 = vmatpush.msra.mxu0 %v16
  %1041 = vmatmul.f32.gmra.mxu0 %v980
  %v1042 = vpop.f32.mrf.mxu0
  %v1043 = vadd.f32 0.0, %v1042
  %1044 = vdwg.mxu0
  %1045 = vmatpush.msra.mxu0 %v77
  %1046 = vmatpush.msra.mxu0 %v73
  %1047 = vmatpush.msra.mxu0 %v69
  %1048 = vmatpush.msra.mxu0 %v65
  %1049 = vmatpush.msra.mxu0 %v61
  %1050 = vmatpush.msra.mxu0 %v57
  %1051 = vmatpush.msra.mxu0 %v53
  %1052 = vmatpush.msra.mxu0 %v49
  %1053 = vmatpush.msra.mxu0 %v45
  %1054 = vmatpush.msra.mxu0 %v41
  %1055 = vmatpush.msra.mxu0 %v37
  %1056 = vmatpush.msra.mxu0 %v33
  %1057 = vmatpush.msra.mxu0 %v29
  %1058 = vmatpush.msra.mxu0 %v25
  %1059 = vmatpush.msra.mxu0 %v21
  %1060 = vmatpush.msra.mxu0 %v17
  %1061 = vmatmul.f32.gmra.mxu0 %v980
  %v1062 = vpop.f32.mrf.mxu0
  %v1063 = vadd.f32 0.0, %v1062
  %1064 = vdwg.mxu0
  %v1069 = vrot.slane %v1023, 6
  %v1070 = vrot.slane %v1043, 4
  %v1071 = vrot.slane %v1063, 2
  %v1072 = vsel %vm167, %v1003, %v1069
  %v1073 = vsel %vm169, %v1070, %v1071
  %v1074 = vsel %vm171, %v1072, %v1073
  %v1076 = vadd.f32 %v984, %v1074
  %v1077 = vxor.u32 %v1076, 2147483648
  %v1078 = vmul.f32 %v1077, 1.442695
  %v1079 = vpow.pop %v1078
  %v1080 = vadd.f32 %v1079, 1.0
  %v1081 = vrcp.pop %v1080
  %v1082 = vmul.f32 %v1080, %v1081
  %v1083 = vsub.f32 1.0, %v1082
  %v1084 = vmul.f32 %v1081, %v1083
  %v1085 = vadd.f32 %v1081, %v1084
  %vm1086 = vweird.f32 %v1080
  %vm1087 = vweird.f32 %v1081
  %vm1088 = vmor %vm1086, %vm1087
  %v1089 = vsel %vm1088, %v1081, %v1085
  %v1090 = vand.u32 2147483647, %v1080
  %vm1091 = vcmp.eq.f32.partialorder %v1090, 8.507059e+37
  %v1092 = vand.u32 %v1080, 2147483648
  %v1093 = vor.u32 1.1754944e-38, %v1092
  %v1094 = vsel %vm1091, %v1093, %v1089
  %v1095 = vmul.f32 1.0, %v1094
  %v1097 = vrot.slane %v1076, 6
  %v1099 = vtanh.pop %v1097
  %v1101 = vrot.slane %v1095, 2
  %v1103 = vmul.f32 %v1101, %v976
  %v1104 = vmul.f32 %v1095, %v1099
  %v1105 = vadd.f32 %v1103, %v1104
  %v1106 = vtanh.pop %v1105
  %v1107 = vrot.slane %v1095, 4
  %v1109 = vmul.f32 %v1107, %v1106
  %s1110 = scalar_lea.vmem %s3, 14
  %1111 = vst [vmem:[%s1110] sm:$0x3] %v1109
  // Predicated region
  $region14: #{trans_nonlinear_lstm_forward.1} parent=0 // pred_check
    _
  $region15: #{trans_nonlinear_lstm_forward.1} parent=0 // pred_check_branch
    %1113 = sbr.rel (0) target = $region17
  $region16: #{trans_nonlinear_lstm_forward.1} parent=0 // pred_region
    _
  $region17: #{trans_nonlinear_lstm_forward.1} parent=0 // pred_fallthru
    _
  // Predicated region
  $region18: #{trans_nonlinear_lstm_forward.1} parent=0 // pred_check
    _
  $region19: #{trans_nonlinear_lstm_forward.1} parent=0 // pred_check_branch
    %1115 = sbr.rel (0) target = $region21
  $region20: #{trans_nonlinear_lstm_forward.1} parent=0 // pred_region
    _
  $region21: #{trans_nonlinear_lstm_forward.1} parent=0 // pred_fallthru
    _

</llo_original>
